<compile_context>
chip_gen: v6e
topology: v6e:2x2x1
jax: 0.10.0
libtpu: 0.0.40
codegen_flags: <defaults>
</compile_context>

<pallas_src>
import jax
import jax.numpy as jnp
from jax.experimental import pallas as pl
from jax.experimental.pallas import tpu as pltpu


def _round_up(x, m):
    return ((x + m - 1) // m) * m


# ---------------------------------------------------------------------------
# Kernels
# ---------------------------------------------------------------------------
def proj_kernel(x_ref, w_ref, o_ref):
    """XW = X @ W^T (W pre-transposed/padded to (C_in, H_pad)); emit bf16."""
    o_ref[...] = jnp.dot(
        x_ref[...], w_ref[...], preferred_element_type=jnp.float32
    ).astype(o_ref.dtype)


def aggregate_prelu_kernel(a_ref, xw_ref, b_ref, alpha_ref, o_ref):
    """o[i] += A[i, k] @ XW[k]; at the last k: o = PReLU(o + bias).

    The output block (f32) is resident across the k axis (its index_map
    returns (i, 0) for every k), so it doubles as the accumulator.
    """
    k = pl.program_id(1)

    @pl.when(k == 0)
    def _():
        o_ref[...] = jnp.zeros_like(o_ref)

    # bf16 x bf16 -> f32 accumulate on the MXU, directly into the output tile
    o_ref[...] += jnp.dot(
        a_ref[...], xw_ref[...], preferred_element_type=jnp.float32
    )

    @pl.when(k == pl.num_programs(1) - 1)
    def _():
        alpha = alpha_ref[0, 0]
        h = o_ref[...] + b_ref[...]           # f32 epilogue
        o_ref[...] = jnp.where(h > 0, h, alpha * h)


# ---------------------------------------------------------------------------
# Plain-JAX glue: dense symmetric-normalized adjacency with self loops,
# scattered directly at padded size (single f32 buffer, single bf16 cast).
# ---------------------------------------------------------------------------
def build_norm_adj_padded(edge_index, edge_weight, num_nodes, rows_pad, cols_pad):
    src = edge_index[0].astype(jnp.int32)
    dst = edge_index[1].astype(jnp.int32)
    if edge_weight is None:
        ew = jnp.ones(src.shape[0], dtype=jnp.float32)
    else:
        ew = edge_weight.astype(jnp.float32)
    loop = jnp.arange(num_nodes, dtype=jnp.int32)
    src = jnp.concatenate([src, loop])
    dst = jnp.concatenate([dst, loop])
    ew = jnp.concatenate([ew, jnp.ones(num_nodes, dtype=jnp.float32)])
    # degree computed over targets (flow = source_to_target)
    deg = jnp.zeros((num_nodes,), jnp.float32).at[dst].add(ew)
    dinv = jnp.where(deg > 0, jax.lax.rsqrt(deg), 0.0)
    norm = dinv[dst] * ew * dinv[src]
    # aggregation: out[dst] += norm * x[src]  =>  A[dst, src] = norm
    a = jnp.zeros((rows_pad, cols_pad), jnp.float32).at[dst, src].add(norm)
    return a  # f32; caller casts to bf16 once


# ---------------------------------------------------------------------------
# VMEM budget / tiling selection (generation-aware)
# ---------------------------------------------------------------------------
def _vmem_budget_bytes():
    cap = None
    try:
        info = pltpu.get_tpu_info()
        cap = getattr(info, "vmem_capacity_bytes", None)
    except Exception:
        cap = None
    if cap is None:
        cap = 64 * 1024 * 1024                      # conservative default
    if cap >= 100 * 1024 * 1024:                    # v5e / v6e (128 MiB)
        return 96 * 1024 * 1024
    return 44 * 1024 * 1024                         # v7x (64 MiB per TC)


def _footprint(tm, tk, h_pad):
    """Worst-case VMEM bytes for one grid step (all inputs double-buffered)."""
    return (2 * tm * tk * 2            # A tiles, bf16
            + 2 * tk * h_pad * 2       # XW tiles, bf16
            + 2 * tm * h_pad * 4       # output tiles, f32 (accumulator)
            + 2 * h_pad * 4            # bias
            + 64 * 1024)               # misc headroom


def _choose_tiles(n, h_pad, budget):
    """Returns (tm, tk, rows_pad, cols_pad)."""
    if n <= 256:
        p = max(16, _round_up(n, 16))              # bf16 sublane packing
        return p, p, p, p

    # Row tile: largest of {1024, 512, 256} that still yields >= 2 row tiles
    # (keeps both v7x TensorCores busy via the "parallel" axis).
    tm = 256
    for cand in (1024, 512, 256):
        if _round_up(n, cand) // cand >= 2:
            tm = cand
            break
    rows_pad = _round_up(n, tm)

    # Column tile: prefer a fully VMEM-resident XW (single k step) when it
    # fits the budget; otherwise stream 1024-wide k tiles (halving if needed).
    cols_res = _round_up(n, 128)
    if _footprint(tm, cols_res, h_pad) <= budget:
        return tm, cols_res, rows_pad, cols_res

    tk = 1024
    while tk > 256 and _footprint(tm, tk, h_pad) > budget:
        tk //= 2
    cols_pad = _round_up(n, tk)
    return tm, tk, rows_pad, cols_pad


# ---------------------------------------------------------------------------
# Projection XW = X @ W^T
# ---------------------------------------------------------------------------
def _project(x_pad, w_t_pad, cols_pad, c_in, h_pad):
    if c_in < 128:
        # Lane-sparse GEMM: let XLA handle it (no kernel-launch overhead).
        return jnp.dot(
            x_pad, w_t_pad, preferred_element_type=jnp.float32
        ).astype(jnp.bfloat16)

    tp = cols_pad
    for cand in (1024, 512, 256):
        if cols_pad % cand == 0:
            tp = cand
            break
    return pl.pallas_call(
        proj_kernel,
        out_shape=jax.ShapeDtypeStruct((cols_pad, h_pad), jnp.bfloat16),
        grid=(cols_pad // tp,),
        in_specs=[
            pl.BlockSpec((tp, c_in), lambda i: (i, 0)),
            pl.BlockSpec((c_in, h_pad), lambda i: (0, 0)),
        ],
        out_specs=pl.BlockSpec((tp, h_pad), lambda i: (i, 0)),
        compiler_params=pltpu.CompilerParams(
            dimension_semantics=("parallel",)),
    )(x_pad, w_t_pad)


# ---------------------------------------------------------------------------
# Wrapper
# ---------------------------------------------------------------------------
def bgrl_encoder_forward(x, edge_index, w, b, alpha, edge_weight=None):
    """x: (N, C_in) f32, edge_index: (2, E) int32, w: (H, C_in), b: (H,)."""
    n, c_in = x.shape
    h = w.shape[0]
    h_pad = _round_up(h, 128)                       # lane-dense output tiles

    budget = _vmem_budget_bytes()
    tm, tk, rows_pad, cols_pad = _choose_tiles(n, h_pad, budget)

    # --- build + pad inputs (adjacency scattered at padded size, cast once) --
    a_bf16 = build_norm_adj_padded(
        edge_index, edge_weight, n, rows_pad, cols_pad).astype(jnp.bfloat16)
    x_pad = jnp.zeros((cols_pad, c_in), jnp.float32).at[:n, :].set(x)
    w_t_pad = jnp.zeros((c_in, h_pad), jnp.float32).at[:, :h].set(w.T)
    b_pad = jnp.zeros((1, h_pad), jnp.float32).at[0, :h].set(b)
    alpha2 = jnp.asarray(alpha, jnp.float32).reshape(1, 1)

    # --- 1) projection XW = X @ W^T (bf16 output) -----------------------------
    xw = _project(x_pad, w_t_pad, cols_pad, c_in, h_pad)

    # --- 2) tiled aggregation A @ XW + bias + PReLU ---------------------------
    grid = (rows_pad // tm, cols_pad // tk)
    num_xw_streams = 1 if tk == cols_pad else rows_pad // tm

    cost = pl.CostEstimate(
        flops=2 * rows_pad * cols_pad * h_pad,
        transcendentals=0,
        bytes_accessed=(rows_pad * cols_pad * 2
                        + num_xw_streams * cols_pad * h_pad * 2
                        + rows_pad * h_pad * 4),
    )

    out_pad = pl.pallas_call(
        aggregate_prelu_kernel,
        out_shape=jax.ShapeDtypeStruct((rows_pad, h_pad), jnp.float32),
        grid=grid,
        in_specs=[
            pl.BlockSpec((tm, tk), lambda i, k: (i, k)),        # A tile
            pl.BlockSpec((tk, h_pad), lambda i, k: (k, 0)),     # XW tile
            pl.BlockSpec((1, h_pad), lambda i, k: (0, 0)),      # bias
            pl.BlockSpec(memory_space=pltpu.MemorySpace.SMEM),  # alpha scalar
        ],
        out_specs=pl.BlockSpec((tm, h_pad), lambda i, k: (i, 0)),
        compiler_params=pltpu.CompilerParams(
            dimension_semantics=("parallel", "arbitrary"),
            vmem_limit_bytes=int(budget)),
        cost_estimate=cost,
    )(a_bf16, xw, b_pad, alpha2)

    return out_pad[:n, :h]


if __name__ == "__main__":
    key = jax.random.PRNGKey(0)
    k_x, k_w, k_e = jax.random.split(key, 3)

    N = 8          # number of nodes
    C_IN = 4       # in_channel
    HID = 32       # hidden_channels (small version of 512)
    E = 16         # number of edges

    # deterministic node features and graph
    x = jax.random.normal(k_x, (N, C_IN), jnp.float32)
    edge_index = jax.random.randint(k_e, (2, E), 0, N, dtype=jnp.int32)

    # deterministic parameter init (mirrors xavier_uniform for the Linear,
    # zero bias, PReLU alpha = 0.25)
    limit = (6.0 / (C_IN + HID)) ** 0.5
    w = jax.random.uniform(k_w, (HID, C_IN), jnp.float32, -limit, limit)
    b = jnp.zeros((HID,), jnp.float32)
    alpha = 0.25

    out = bgrl_encoder_forward(x, edge_index, w, b, alpha)
    jax.block_until_ready(out)

    # pure-JAX f32 reference (kernel streams A/XW in bf16 -> loose tolerance)
    a_ref = build_norm_adj_padded(edge_index, None, N, N, N)
    h_ref = a_ref @ (x @ w.T) + b
    ref = jnp.where(h_ref > 0, h_ref, alpha * h_ref)
    assert out.shape == ref.shape
    assert jnp.allclose(out, ref, atol=3e-2, rtol=3e-2), float(
        jnp.max(jnp.abs(out - ref)))

    print("KERNEL_OK")
</pallas_src>

<mosaic_0001>
module attributes {stable_mosaic.version = 11 : i64} {
  func.func @aggregate_prelu_kernel(%arg0: i32, %arg1: i32, %arg2: memref<16x16xbf16, #tpu.memory_space<vmem>>, %arg3: memref<16x128xbf16, #tpu.memory_space<vmem>>, %arg4: memref<1x128xf32, #tpu.memory_space<vmem>>, %arg5: memref<1x1xf32, #tpu.memory_space<smem>>, %arg6: memref<16x128xf32, #tpu.memory_space<vmem>>) attributes {dimension_semantics = [#tpu.dimension_semantics<parallel>, #tpu.dimension_semantics<arbitrary>], iteration_bounds = array<i64: 1, 1>, scalar_prefetch = 0 : i64, scratch_operands = 0 : i64, tpu.core_type = #tpu.core_type<tc>, window_params = [{transform_indices = @transform_0, window_bounds = array<i64: 16, 16>}, {transform_indices = @transform_1, window_bounds = array<i64: 16, 128>}, {pipeline_mode = #tpu.pipeline_mode<synchronous>, transform_indices = @transform_2, window_bounds = array<i64: 1, 128>}, {transform_indices = @transform_3, window_bounds = array<i64: 1, 1>}, {transform_indices = @transform_4, window_bounds = array<i64: 16, 128>}]} {
    %c0_i32 = arith.constant 0 : i32
    %0 = arith.cmpi eq, %arg1, %c0_i32 : i32
    %1 = arith.extui %0 : i1 to i32
    %c0_i32_0 = arith.constant 0 : i32
    %2 = arith.cmpi ne, %1, %c0_i32_0 : i32
    scf.if %2 {
      %cst_10 = arith.constant 0.000000e+00 : f32
      %12 = vector.broadcast %cst_10 : f32 to vector<16x128xf32>
      %c0_11 = arith.constant 0 : index
      %c0_12 = arith.constant 0 : index
      %13 = vector.load %arg6[%c0_11, %c0_12] : memref<16x128xf32, #tpu.memory_space<vmem>>, vector<16x128xf32>
      tpu.vector_store %arg6[%c0_11, %c0_12], %12 {strides = array<i32>} : memref<16x128xf32, #tpu.memory_space<vmem>>, vector<16x128xf32>,
    } else {
    }
    %c0 = arith.constant 0 : index
    %c0_1 = arith.constant 0 : index
    %3 = vector.load %arg6[%c0, %c0_1] : memref<16x128xf32, #tpu.memory_space<vmem>>, vector<16x128xf32>
    %c0_2 = arith.constant 0 : index
    %c0_3 = arith.constant 0 : index
    %4 = vector.load %arg2[%c0_2, %c0_3] : memref<16x16xbf16, #tpu.memory_space<vmem>>, vector<16x16xbf16>
    %c0_4 = arith.constant 0 : index
    %c0_5 = arith.constant 0 : index
    %5 = vector.load %arg3[%c0_4, %c0_5] : memref<16x128xbf16, #tpu.memory_space<vmem>>, vector<16x128xbf16>
    %cst = arith.constant dense<0.000000e+00> : vector<16x128xf32>
    %6 = tpu.matmul %4, %5, %cst {dimension_numbers = #tpu.dot_dimension_numbers<[1], [0], [0], [1], [0, 0, 1, 1], [], []>} : vector<16x16xbf16>, vector<16x128xbf16>, vector<16x128xf32> -> vector<16x128xf32>
    %7 = arith.addf %3, %6 : vector<16x128xf32>
    %c0_6 = arith.constant 0 : index
    %c0_7 = arith.constant 0 : index
    %8 = vector.load %arg6[%c0_6, %c0_7] : memref<16x128xf32, #tpu.memory_space<vmem>>, vector<16x128xf32>
    tpu.vector_store %arg6[%c0_6, %c0_7], %7 {strides = array<i32>} : memref<16x128xf32, #tpu.memory_space<vmem>>, vector<16x128xf32>,
    %c0_i32_8 = arith.constant 0 : i32
    %9 = arith.cmpi eq, %arg1, %c0_i32_8 : i32
    %10 = arith.extui %9 : i1 to i32
    %c0_i32_9 = arith.constant 0 : i32
    %11 = arith.cmpi ne, %10, %c0_i32_9 : i32
    scf.if %11 {
      %c0_10 = arith.constant 0 : index
      %c0_11 = arith.constant 0 : index
      %12 = memref.load %arg5[%c0_10, %c0_11] : memref<1x1xf32, #tpu.memory_space<smem>>
      %c0_12 = arith.constant 0 : index
      %c0_13 = arith.constant 0 : index
      %13 = vector.load %arg6[%c0_12, %c0_13] : memref<16x128xf32, #tpu.memory_space<vmem>>, vector<16x128xf32>
      %c0_14 = arith.constant 0 : index
      %c0_15 = arith.constant 0 : index
      %14 = vector.load %arg4[%c0_14, %c0_15] : memref<1x128xf32, #tpu.memory_space<vmem>>, vector<1x128xf32>
      %15 = vector.broadcast %14 : vector<1x128xf32> to vector<16x128xf32>
      %16 = arith.addf %13, %15 : vector<16x128xf32>
      %cst_16 = arith.constant 0.000000e+00 : f32
      %17 = vector.broadcast %cst_16 : f32 to vector<16x128xf32>
      %18 = arith.cmpf ogt, %16, %17 : vector<16x128xf32>
      %19 = vector.broadcast %12 : f32 to vector<16x128xf32>
      %20 = arith.mulf %19, %16 : vector<16x128xf32>
      %21 = arith.select %18, %16, %20 : vector<16x128xi1>, vector<16x128xf32>
      %c0_17 = arith.constant 0 : index
      %c0_18 = arith.constant 0 : index
      %22 = vector.load %arg6[%c0_17, %c0_18] : memref<16x128xf32, #tpu.memory_space<vmem>>, vector<16x128xf32>
      tpu.vector_store %arg6[%c0_17, %c0_18], %21 {strides = array<i32>} : memref<16x128xf32, #tpu.memory_space<vmem>>, vector<16x128xf32>,
    } else {
    }
    return
  }
  func.func @transform_0(%arg0: i32, %arg1: i32) -> (i32, i32) {
    %c0_i32 = arith.constant 0 : i32
    return %arg0, %arg1 : i32, i32
  }
  func.func @transform_1(%arg0: i32, %arg1: i32) -> (i32, i32) {
    %c0_i32 = arith.constant 0 : i32
    %c0_i32_0 = arith.constant 0 : i32
    return %arg1, %c0_i32 : i32, i32
  }
  func.func @transform_2(%arg0: i32, %arg1: i32) -> (i32, i32) {
    %c0_i32 = arith.constant 0 : i32
    %c0_i32_0 = arith.constant 0 : i32
    %c0_i32_1 = arith.constant 0 : i32
    return %c0_i32, %c0_i32_0 : i32, i32
  }
  func.func @transform_3(%arg0: i32, %arg1: i32) -> (i32, i32) {
    %c0_i32 = arith.constant 0 : i32
    %c0_i32_0 = arith.constant 0 : i32
    %c0_i32_1 = arith.constant 0 : i32
    return %c0_i32, %c0_i32_0 : i32, i32
  }
  func.func @transform_4(%arg0: i32, %arg1: i32) -> (i32, i32) {
    %c0_i32 = arith.constant 0 : i32
    %c0_i32_0 = arith.constant 0 : i32
    return %arg0, %c0_i32 : i32, i32
  }
}

</mosaic_0001>

<llo_original>
// kernel: tpu_custom_call.1
$region0: #{tpu_custom_call.1}
  #allocation0 [shape = 'u32[]', space=smem, size = 0x4, offset = 0x4, fixed_abs, tag = 'smem constant byte address 0x4 - core index']
  #allocation1 [shape = 'u32[144,128]{1,0:T(1,128)}', space=vmem, size = 0x12000, scoped, tag = 'internal scratch']
  #allocation2 [shape = 'f32[1,1]{1,0:T(1,128)S(6)}', space=smem, size = 0x200, scoped, tag = 'scoped memory for tpu_custom_call.1']
  %s0 = inlined_call_operand.hbm [shape: bf16[16,16], index: 0, kind: input, shape index: {}]
  %s1 = inlined_call_operand.hbm [shape: bf16[16,128], index: 1, kind: input, shape index: {}]
  %s2 = inlined_call_operand.vmem [shape: f32[1,128], index: 2, kind: input, shape index: {}]
  %s3 = inlined_call_operand.<no memory space> [shape: f32[1,1], index: 3, kind: input, shape index: {}]
  %s4 = inlined_call_operand.hbm [shape: f32[16,128], index: 4, kind: output, shape index: {}]
  %s5 = sld [smem:[#allocation0]]
  $region42: #{tpu_custom_call.1} parent=0
    _
  %s7 = ssub.s32 1, %s5
  %s8 = scalar_select 0, %s7, %s5
  %9 = sst [smem:[#allocation2]] %s3
  $region1: #{tpu_custom_call.1} parent=0
    #allocation3 [shape = 'u8[4096]{0}', space=vmem, size = 0x1000, scoped, tag = 'input window, operand 0, single buffered']
    #allocation4 [shape = 's32[1]{0}', space=sflag, size = 0x4, scoped, tag = 'scoped memory for tpu_custom_call.1']
    #allocation5 [shape = 's32[1]{0}', space=sflag, size = 0x4, scoped, tag = 'scoped memory for tpu_custom_call.1']
    #allocation6 [shape = 'u8[4096]{0}', space=vmem, size = 0x1000, scoped, tag = 'input window, operand 1, single buffered']
    #allocation7 [shape = 's32[1]{0}', space=sflag, size = 0x4, scoped, tag = 'scoped memory for tpu_custom_call.1']
    #allocation8 [shape = 'u8[8192]{0}', space=vmem, size = 0x2000, scoped, tag = 'output window, operand 0, single buffered']
    %10 = vsyncpa [#allocation4], 0
    %11 = vsyncpa [#allocation7], 0
    %12 = vsyncpa [#allocation5], 0
    // Predicated region
    $region2: #{tpu_custom_call.1} parent=1 // pred_check
      _
    $region3: #{tpu_custom_call.1} parent=1 // pred_check_branch
      %14 = sbr.rel (0) target = $region5
    $region4: #{tpu_custom_call.1} parent=1 // pred_region
      %s16 = ssub.s32 128, 128
      %17 = vsyncadd [#allocation4], %s16
      %s18 = sshll.u32 [#allocation3], 4
      %s19 = int_to_ptr.vmem [resolvable:$true] %s18
      %24 = dma.hbm_to_vmem [thread:$0]  %s0, 128, %s19, [#allocation4], 64, 64, 4
    $region5: #{tpu_custom_call.1} parent=1 // pred_fallthru
      _
    // Predicated region
    $region6: #{tpu_custom_call.1} parent=1 // pred_check
      _
    $region7: #{tpu_custom_call.1} parent=1 // pred_check_branch
      %26 = sbr.rel (0) target = $region9
    $region8: #{tpu_custom_call.1} parent=1 // pred_region
      %s28 = ssub.s32 128, 128
      %29 = vsyncadd [#allocation7], %s28
      %s30 = sshll.u32 [#allocation6], 4
      %s31 = int_to_ptr.vmem [resolvable:$true] %s30
      %36 = dma.hbm_to_vmem [thread:$0]  %s1, 128, %s31, [#allocation7], 64, 64, 4
    $region9: #{tpu_custom_call.1} parent=1 // pred_fallthru
      _
    // Predicated region
    $region10: #{tpu_custom_call.1} parent=1 // pred_check
      _
    $region11: #{tpu_custom_call.1} parent=1 // pred_check_branch
      %38 = sbr.rel (0) target = $region13
    $region12: #{tpu_custom_call.1} parent=1 // pred_region
      _
    $region13: #{tpu_custom_call.1} parent=1 // pred_fallthru
      _
    // Predicated region
    $region14: #{tpu_custom_call.1} parent=1 // pred_check
      _
    $region15: #{tpu_custom_call.1} parent=1 // pred_check_branch
      %40 = sbr.rel (0) target = $region17
    $region16: #{tpu_custom_call.1} parent=1 // pred_region
      _
    $region17: #{tpu_custom_call.1} parent=1 // pred_fallthru
      _
    // Predicated region
    $region18: #{tpu_custom_call.1} parent=1 // pred_check
      _
    $region19: #{tpu_custom_call.1} parent=1 // pred_check_branch
      %42 = sbr.rel (0) target = $region21
    $region20: #{tpu_custom_call.1} parent=1 // pred_region
      %43 = dma.done [#allocation4], 128
    $region21: #{tpu_custom_call.1} parent=1 // pred_fallthru
      _
    // Predicated region
    $region22: #{tpu_custom_call.1} parent=1 // pred_check
      _
    $region23: #{tpu_custom_call.1} parent=1 // pred_check_branch
      %45 = sbr.rel (0) target = $region25
    $region24: #{tpu_custom_call.1} parent=1 // pred_region
      %46 = dma.done [#allocation7], 128
    $region25: #{tpu_custom_call.1} parent=1 // pred_fallthru
      _
    %p48 = scmp.eq.s32.totalorder 0, 0
    // Predicated region
    $region26: #{tpu_custom_call.1} parent=1 // pred_check
      %p49 = pneg %p48
    $region27: #{tpu_custom_call.1} parent=1 // pred_check_branch
      %51 = sbr.rel (%p49) target = $region29
    $region28: #{tpu_custom_call.1} parent=1 // pred_region
      %52 = vst [vmem:[#allocation8] sm:$0xff] 0.0
      %53 = vst [vmem:[#allocation8 + $0x8] sm:$0xff] 0.0
    $region29: #{tpu_custom_call.1} parent=1 // pred_fallthru
      _
    %v54 = vld [vmem:[#allocation8] sm:$0xff]
    %v55 = vld [vmem:[#allocation8 + $0x8] sm:$0xff]
    %v56 = vld [vmem:[#allocation3] sm:$0xf]
    %v57 = vld [vmem:[#allocation3 + $0x4] sm:$0xf]
    %v58 = vld [vmem:[#allocation6] sm:$0xf]
    %v59 = vld [vmem:[#allocation6 + $0x4] sm:$0xf]
    %v62 = vunpack.c.l.b16 %v56
    %v63 = vunpack.c.l.b16 %v57
    %v64 = vpack.c.b16 %v63, %v62
    %v67 = vunpack.c.l.b16 %v58
    %v68 = vunpack.c.l.b16 %v59
    %v69 = vpack.c.b16 %v68, %v67
    %vm71 = vcmask 130048
    %v73 = vsel %vm71, %v64, 0
    %75 = vmatprep.subr.bf16.mxu0 0
    %76 = vmatpush1.bf16.msra.mxu0 0
    %77 = vmatprep.subr.bf16.mxu0 0
    %78 = vmatpush1.bf16.msra.mxu0 0
    %79 = vmatprep.subr.bf16.mxu0 0
    %80 = vmatpush1.bf16.msra.mxu0 0
    %81 = vmatprep.subr.bf16.mxu0 0
    %82 = vmatpush1.bf16.msra.mxu0 0
    %83 = vmatprep.subr.bf16.mxu0 0
    %84 = vmatpush1.bf16.msra.mxu0 0
    %85 = vmatprep.subr.bf16.mxu0 0
    %86 = vmatpush1.bf16.msra.mxu0 0
    %87 = vmatprep.subr.bf16.mxu0 0
    %88 = vmatpush1.bf16.msra.mxu0 0
    %89 = vmatprep.subr.bf16.mxu0 0
    %90 = vmatpush1.bf16.msra.mxu0 %v69
    %91 = vmatprep.subr.bf16.mxu0 0
    %92 = vmatpush2.bf16.msra.mxu0 0
    %93 = vmatprep.subr.bf16.mxu0 0
    %94 = vmatpush2.bf16.msra.mxu0 0
    %95 = vmatprep.subr.bf16.mxu0 0
    %96 = vmatpush2.bf16.msra.mxu0 0
    %97 = vmatprep.subr.bf16.mxu0 0
    %98 = vmatpush2.bf16.msra.mxu0 0
    %99 = vmatprep.subr.bf16.mxu0 0
    %100 = vmatpush2.bf16.msra.mxu0 0
    %101 = vmatprep.subr.bf16.mxu0 0
    %102 = vmatpush2.bf16.msra.mxu0 0
    %103 = vmatprep.subr.bf16.mxu0 0
    %104 = vmatpush2.bf16.msra.mxu0 0
    %105 = vmatprep.subr.bf16.mxu0 0
    %106 = vmatpush2.bf16.msra.mxu0 0
    %107 = vmatprep.mubr.bf16.mxu0 0
    %108 = vmatmul.mubr.bf16.gmra.mxu0 %v73
    %v109 = vpop.f32.mrf.mxu0
    %v110 = vadd.f32 0.0, %v109
    %v111 = vpop.f32.mrf.mxu0
    %v112 = vpop.f32.mrf.mxu0
    %v113 = vadd.f32 0.0, %v112
    %v114 = vpop.f32.mrf.mxu0
    %115 = vdwg.mxu0
    %v116 = vadd.f32 %v54, %v110
    %v117 = vadd.f32 %v55, %v113
    %118 = vst [vmem:[#allocation8] sm:$0xff] %v116
    %119 = vst [vmem:[#allocation8 + $0x8] sm:$0xff] %v117
    // Predicated region
    $region30: #{tpu_custom_call.1} parent=1 // pred_check
      %p120 = pneg %p48
    $region31: #{tpu_custom_call.1} parent=1 // pred_check_branch
      %122 = sbr.rel (%p120) target = $region33
    $region32: #{tpu_custom_call.1} parent=1 // pred_region
      %s123 = sld [smem:[#allocation2]]
      %v124 = vld [vmem:[#allocation8] sm:$0xff]
      %v125 = vld [vmem:[#allocation8 + $0x8] sm:$0xff]
      %v126 = vld [vmem:[%s2] sm:$0x1]
      %v128 = vlaneseq
      %v129 = vshrl.u32 %v128, 7
      %v130 = vsub.s32 0, %v129
      %v131 = vrot.slane %v126, %v130
      %v133 = vadd.f32 %v124, %v131
      %v134 = vadd.f32 %v125, %v131
      %vm135 = vcmp.gt.f32.partialorder %v133, 0.0
      %vm136 = vcmp.gt.f32.partialorder %v134, 0.0
      %v137 = vstv %s123
      %v138 = vmul.f32 %v137, %v133
      %v139 = vmul.f32 %v137, %v134
      %v140 = vsel %vm135, %v133, %v138
      %v141 = vsel %vm136, %v134, %v139
      %142 = vst [vmem:[#allocation8] sm:$0xff] %v140
      %143 = vst [vmem:[#allocation8 + $0x8] sm:$0xff] %v141
    $region33: #{tpu_custom_call.1} parent=1 // pred_fallthru
      _
    // Predicated region
    $region34: #{tpu_custom_call.1} parent=1 // pred_check
      _
    $region35: #{tpu_custom_call.1} parent=1 // pred_check_branch
      %145 = sbr.rel (0) target = $region37
    $region36: #{tpu_custom_call.1} parent=1 // pred_region
      %s147 = ssub.s32 256, 256
      %148 = vsyncadd [#allocation5], %s147
      %s149 = sshll.u32 [#allocation8], 4
      %s150 = int_to_ptr.vmem [resolvable:$true] %s149
      %155 = dma.vmem_to_hbm [thread:$0]  %s150, 256, %s4, [#allocation5], 128, 128, 8
    $region37: #{tpu_custom_call.1} parent=1 // pred_fallthru
      _
    // Predicated region
    $region38: #{tpu_custom_call.1} parent=1 // pred_check
      _
    $region39: #{tpu_custom_call.1} parent=1 // pred_check_branch
      %157 = sbr.rel (0) target = $region41
    $region40: #{tpu_custom_call.1} parent=1 // pred_region
      %158 = dma.done [#allocation5], 256
    $region41: #{tpu_custom_call.1} parent=1 // pred_fallthru
      _
    %159 = vsyncpa [#allocation4], 1
    %160 = vsyncpa [#allocation7], 1
    %161 = vsyncpa [#allocation5], 1

</llo_original>
